<compile_context>
chip_gen: v5e
topology: v5e:2x2
jax: 0.10.0
libtpu: 0.0.40
codegen_flags: <defaults>
</compile_context>

<pallas_src>
import jax
import jax.numpy as jnp
from jax import lax
from jax.experimental import pallas as pl
from jax.experimental.pallas import tpu as pltpu

LEAKY_SLOPE = 0.2
BN_EPS = 1e-5


def _leaky(x):
    return jnp.where(x >= 0, x, LEAKY_SLOPE * x)


# ---------------------------------------------------------------------------
# Parameter preprocessing (plain JAX, wrapper-side)
# ---------------------------------------------------------------------------
def _banded_conv_weight(w_hwio, W):
    """3x3 'same' conv as ONE (3*W*Cin, W*Cout) banded matrix (ky-major K).

    wf[(ky*W + xi)*Cin + c, xo*Cout + o] = w[ky, xi - xo + 1, c, o]  (0 off-band)
    so the conv is:  [a(row-1) | a(row) | a(row+1)] @ wf   on lane-dense tiles.
    W-direction zero padding is implicit in the zero band entries.
    """
    KH, KW, Cin, Cout = w_hwio.shape
    kx = jnp.arange(KW)[:, None, None]
    xi = jnp.arange(W)[None, :, None]
    xo = jnp.arange(W)[None, None, :]
    ind = (xi == xo + kx - (KW // 2)).astype(w_hwio.dtype)       # (KW, W, W)
    wb = jnp.einsum("kxy,hkco->hxcyo", ind, w_hwio)              # (KH,W,Cin,W,Cout)
    return wb.reshape(KH * W * Cin, W * Cout)


def _blockdiag_1x1_weight(w_io, W):
    """1x1 conv (no bias) as a block-diagonal (W*Cin, W*Cout) lane-dense matmul."""
    Cin, Cout = w_io.shape
    eye = jnp.eye(W, dtype=w_io.dtype)
    return jnp.einsum("xy,co->xcyo", eye, w_io).reshape(W * Cin, W * Cout)


def _bn_scale_bias(x_nhwc, gamma, beta):
    """Fold training-mode BatchNorm2d into per-channel (scale, bias). (reference)"""
    mean = x_nhwc.mean(axis=(0, 1, 2))
    var = x_nhwc.var(axis=(0, 1, 2))             # biased, like torch BN norm
    scale = gamma / jnp.sqrt(var + BN_EPS)
    bias = beta - mean * scale
    return scale, bias


# ---------------------------------------------------------------------------
# The fused Pallas kernel
# ---------------------------------------------------------------------------
def _make_resnet_block_kernel(learned, B, H, W, cin, cmid, cout):
    BH = B * H
    WCin, WCmid, WCout = W * cin, W * cmid, W * cout

    def kernel(*refs):
        if learned:
            (x_ref, s0_ref, b0_ref, w0_ref, cb0_ref, g1_ref, be1_ref, tn_ref,
             w1_ref, cb1_ref, ss_ref, bs_ref, o_ref) = refs
        else:
            (x_ref, s0_ref, b0_ref, w0_ref, cb0_ref, g1_ref, be1_ref, tn_ref,
             w1_ref, cb1_ref, o_ref) = refs

        # Per-row (sublane) image-boundary masks, shared by both convs.
        y = lax.broadcasted_iota(jnp.int32, (BH, 1), 0) % H
        not_top = y != 0
        not_bot = y != (H - 1)

        def taps(a):
            """[a[r-1] | a[r] | a[r+1]] along lanes, zero outside the image.

            pltpu.roll matches jnp.roll semantics: roll(a, 1)[r] = a[r-1];
            rows that wrap across the batch/image boundary are masked to 0.
            """
            up = jnp.where(not_top, pltpu.roll(a, shift=1, axis=0), 0.0)
            dn = jnp.where(not_bot, pltpu.roll(a, shift=BH - 1, axis=0), 0.0)
            return jnp.concatenate([up, a, dn], axis=1)

        # ---- stage 0: bn_0 (pre-folded) + leaky + conv_0 as ONE bf16 matmul -
        x2 = x_ref[...].reshape(BH, WCin)                 # lane-dense view
        a0 = _leaky(x2 * s0_ref[...] + b0_ref[...])       # full-lane VPU work
        h = cb0_ref[...] + jnp.dot(taps(a0).astype(jnp.bfloat16), w0_ref[...],
                                   preferred_element_type=jnp.float32)
        # h: (BH, WCmid) f32, stays in VMEM/vregs.

        # ---- bn_1: batch stats via ONE (2, WCmid) matmul against tn --------
        # tn[i, j] = 1/(B*H*W) if i and j map to the same channel, else 0.
        sums = jnp.concatenate(
            [jnp.sum(h, axis=0, keepdims=True),
             jnp.sum(h * h, axis=0, keepdims=True)], axis=0)      # (2, WCmid)
        stats = jnp.dot(sums, tn_ref[...],
                        preferred_element_type=jnp.float32)       # (2, WCmid)
        mean_t = stats[0:1, :]
        var_t = stats[1:2, :] - mean_t * mean_t                   # E[h^2]-mean^2
        inv_t = lax.rsqrt(var_t + BN_EPS)
        a1 = _leaky((h - mean_t) * (g1_ref[...] * inv_t) + be1_ref[...])

        # ---- stage 1: conv_1 (+ learned 1x1 shortcut) as ONE bf16 matmul ----
        lhs1 = taps(a1)                                   # (BH, 3*WCmid)
        if learned:
            xs = x2 * ss_ref[...] + bs_ref[...]           # bn_s folded
            lhs1 = jnp.concatenate([lhs1, xs], axis=1)    # K = 3*WCmid + WCin
        out = cb1_ref[...] + jnp.dot(lhs1.astype(jnp.bfloat16), w1_ref[...],
                                     preferred_element_type=jnp.float32)
        if not learned:
            out = out + x2                                # identity shortcut

        o_ref[...] = out.reshape(B, H, WCout)             # lane-dense store

    return kernel


def _whole_array_spec(arr):
    nd = arr.ndim
    return pl.BlockSpec(arr.shape, lambda i, nd=nd: (0,) * nd)


# ---------------------------------------------------------------------------
# Wrapper
# ---------------------------------------------------------------------------
def pallas_resnet_block(x_nchw, p, fin, fout):
    learned = fin != fout
    fmid = min(fin, fout)
    B, _, H, W = x_nchw.shape

    x = jnp.transpose(x_nchw, (0, 2, 3, 1)).astype(jnp.float32)   # NCHW -> NHWC
    x_ld = x.reshape(B, H, W * fin)                               # lane-dense

    def tile_w(v):                       # (C,) -> (1, W*C), channel fastest
        return jnp.tile(v, W).reshape(1, W * v.shape[0])

    # bn_0 and bn_s normalize the same x -> ONE shared reduction pass.
    mean = x.mean(axis=(0, 1, 2))
    var = x.var(axis=(0, 1, 2))                    # biased, like torch BN norm
    inv = 1.0 / jnp.sqrt(var + BN_EPS)
    s0 = p["g0"] * inv
    b0 = p["be0"] - mean * s0

    tn = jnp.tile(jnp.eye(fmid, dtype=jnp.float32), (W, W)) / float(B * H * W)

    w1f = _banded_conv_weight(p["w1"], W)                         # (3*W*fmid, W*fout)
    if learned:
        w1f = jnp.concatenate([w1f, _blockdiag_1x1_weight(p["ws"], W)], axis=0)

    args = [
        x_ld, tile_w(s0), tile_w(b0),
        _banded_conv_weight(p["w0"], W).astype(jnp.bfloat16),     # (3*W*fin, W*fmid)
        tile_w(p["b0"]),
        tile_w(p["g1"]), tile_w(p["be1"]),
        tn,
        w1f.astype(jnp.bfloat16),
        tile_w(p["b1"]),
    ]
    if learned:
        ss = p["gs"] * inv
        bs = p["bes"] - mean * ss
        args += [tile_w(ss), tile_w(bs)]

    out_ld = pl.pallas_call(
        _make_resnet_block_kernel(learned, B, H, W, fin, fmid, fout),
        out_shape=jax.ShapeDtypeStruct((B, H, W * fout), jnp.float32),
        grid_spec=pltpu.PrefetchScalarGridSpec(
            num_scalar_prefetch=0,
            grid=(1,),
            in_specs=[_whole_array_spec(a) for a in args],
            out_specs=pl.BlockSpec((B, H, W * fout), lambda i: (0, 0, 0)),
        ),
        compiler_params=pltpu.CompilerParams(
            dimension_semantics=("arbitrary",)),
    )(*args)

    out = out_ld.reshape(B, H, W, fout)
    return jnp.transpose(out, (0, 3, 1, 2))                       # NHWC -> NCHW


# ---------------------------------------------------------------------------
# Parameter init (fresh PyTorch module: spectral norm, BN gamma=1/beta=0)
# ---------------------------------------------------------------------------
def _spectral_normalize(w, key, n_iter=1, eps=1e-12):
    w_mat = w.reshape(w.shape[0], -1)
    u = jax.random.normal(key, (w.shape[0],), jnp.float32)
    u = u / (jnp.linalg.norm(u) + eps)
    v = u
    for _ in range(n_iter):
        v = w_mat.T @ u
        v = v / (jnp.linalg.norm(v) + eps)
        u = w_mat @ v
        u = u / (jnp.linalg.norm(u) + eps)
    sigma = u @ (w_mat @ v)
    return w / sigma


def init_resnet_block_params(key, fin, fout):
    fmid = min(fin, fout)
    ks = jax.random.split(key, 8)

    def conv_w(k, cout, cin, kh, kw):
        fan_in = cin * kh * kw
        lim = 1.0 / jnp.sqrt(jnp.float32(fan_in))
        return jax.random.uniform(k, (cout, cin, kh, kw), jnp.float32, -lim, lim)

    w0 = _spectral_normalize(conv_w(ks[0], fmid, fin, 3, 3), ks[4])
    w1 = _spectral_normalize(conv_w(ks[2], fout, fmid, 3, 3), ks[5])
    p = dict(
        w0=jnp.transpose(w0, (2, 3, 1, 0)),   # OIHW -> HWIO
        b0=jax.random.uniform(ks[1], (fmid,), jnp.float32, -0.1, 0.1),
        w1=jnp.transpose(w1, (2, 3, 1, 0)),
        b1=jax.random.uniform(ks[3], (fout,), jnp.float32, -0.1, 0.1),
        g0=jnp.ones((fin,), jnp.float32), be0=jnp.zeros((fin,), jnp.float32),
        g1=jnp.ones((fmid,), jnp.float32), be1=jnp.zeros((fmid,), jnp.float32),
    )
    if fin != fout:
        ws = _spectral_normalize(conv_w(ks[6], fout, fin, 1, 1), ks[7])
        p["ws"] = jnp.transpose(ws[:, :, 0, 0], (1, 0))   # (fin, fout)
        p["gs"] = jnp.ones((fin,), jnp.float32)
        p["bes"] = jnp.zeros((fin,), jnp.float32)
    return p


# ---------------------------------------------------------------------------
# Pure-JAX reference (same semantics; conv operands in bf16 like the kernel,
# accumulation in f32) for validation.
# ---------------------------------------------------------------------------
def reference_resnet_block(x_nchw, p, fin, fout):
    learned = fin != fout
    x = jnp.transpose(x_nchw, (0, 2, 3, 1)).astype(jnp.float32)

    def conv3x3(v, w, b):
        y = lax.conv_general_dilated(
            v.astype(jnp.bfloat16), w.astype(jnp.bfloat16), (1, 1), "SAME",
            dimension_numbers=("NHWC", "HWIO", "NHWC"),
            preferred_element_type=jnp.float32)
        return y + b

    s0, b0 = _bn_scale_bias(x, p["g0"], p["be0"])
    h = conv3x3(_leaky(x * s0 + b0), p["w0"], p["b0"])

    s1, b1 = _bn_scale_bias(h, p["g1"], p["be1"])
    dx_ = conv3x3(_leaky(h * s1 + b1), p["w1"], p["b1"])

    if learned:
        ss, bs = _bn_scale_bias(x, p["gs"], p["bes"])
        xs = (x * ss + bs).astype(jnp.bfloat16)
        x_s = jnp.einsum("bhwc,co->bhwo", xs, p["ws"].astype(jnp.bfloat16),
                         preferred_element_type=jnp.float32)
    else:
        x_s = x
    out = x_s + dx_
    return jnp.transpose(out, (0, 3, 1, 2))


# ---------------------------------------------------------------------------
if __name__ == "__main__":
    key = jax.random.PRNGKey(0)
    kx, kp, kp2 = jax.random.split(key, 3)
    B, H, W = 2, 16, 16

    # case 1: fin != fout -> learned (spectral-norm 1x1) shortcut, fused in K
    fin, fout = 4, 8
    x = jax.random.normal(kx, (B, fin, H, W), jnp.float32)        # NCHW like PyTorch
    params = init_resnet_block_params(kp, fin, fout)

    out = jax.block_until_ready(pallas_resnet_block(x, params, fin, fout))
    ref = reference_resnet_block(x, params, fin, fout)
    assert out.shape == (B, fout, H, W), out.shape
    assert jnp.allclose(out, ref, atol=2e-2, rtol=2e-2), \
        float(jnp.max(jnp.abs(out - ref)))

    # case 2: fin == fout -> identity shortcut (static fast path, no matmul)
    fin2 = fout2 = 8
    x2 = jax.random.normal(kx, (B, fin2, H, W), jnp.float32)
    params2 = init_resnet_block_params(kp2, fin2, fout2)

    out2 = jax.block_until_ready(pallas_resnet_block(x2, params2, fin2, fout2))
    ref2 = reference_resnet_block(x2, params2, fin2, fout2)
    assert out2.shape == (B, fout2, H, W), out2.shape
    assert jnp.allclose(out2, ref2, atol=2e-2, rtol=2e-2), \
        float(jnp.max(jnp.abs(out2 - ref2)))

    print("KERNEL_OK")
</pallas_src>

<mosaic_0001>
module attributes {stable_mosaic.version = 11 : i64} {
  func.func @kernel(%arg0: i32, %arg1: memref<2x16x64xf32, #tpu.memory_space<vmem>>, %arg2: memref<1x64xf32, #tpu.memory_space<vmem>>, %arg3: memref<1x64xf32, #tpu.memory_space<vmem>>, %arg4: memref<192x64xbf16, #tpu.memory_space<vmem>>, %arg5: memref<1x64xf32, #tpu.memory_space<vmem>>, %arg6: memref<1x64xf32, #tpu.memory_space<vmem>>, %arg7: memref<1x64xf32, #tpu.memory_space<vmem>>, %arg8: memref<64x64xf32, #tpu.memory_space<vmem>>, %arg9: memref<256x128xbf16, #tpu.memory_space<vmem>>, %arg10: memref<1x128xf32, #tpu.memory_space<vmem>>, %arg11: memref<1x64xf32, #tpu.memory_space<vmem>>, %arg12: memref<1x64xf32, #tpu.memory_space<vmem>>, %arg13: memref<2x16x128xf32, #tpu.memory_space<vmem>>) attributes {dimension_semantics = [#tpu.dimension_semantics<arbitrary>], iteration_bounds = array<i64: 1>, scalar_prefetch = 0 : i64, scratch_operands = 0 : i64, tpu.core_type = #tpu.core_type<tc>, window_params = [{pipeline_mode = #tpu.pipeline_mode<synchronous>, transform_indices = @transform_0, window_bounds = array<i64: 2, 16, 64>}, {pipeline_mode = #tpu.pipeline_mode<synchronous>, transform_indices = @transform_1, window_bounds = array<i64: 1, 64>}, {pipeline_mode = #tpu.pipeline_mode<synchronous>, transform_indices = @transform_2, window_bounds = array<i64: 1, 64>}, {pipeline_mode = #tpu.pipeline_mode<synchronous>, transform_indices = @transform_3, window_bounds = array<i64: 192, 64>}, {pipeline_mode = #tpu.pipeline_mode<synchronous>, transform_indices = @transform_4, window_bounds = array<i64: 1, 64>}, {pipeline_mode = #tpu.pipeline_mode<synchronous>, transform_indices = @transform_5, window_bounds = array<i64: 1, 64>}, {pipeline_mode = #tpu.pipeline_mode<synchronous>, transform_indices = @transform_6, window_bounds = array<i64: 1, 64>}, {pipeline_mode = #tpu.pipeline_mode<synchronous>, transform_indices = @transform_7, window_bounds = array<i64: 64, 64>}, {pipeline_mode = #tpu.pipeline_mode<synchronous>, transform_indices = @transform_8, window_bounds = array<i64: 256, 128>}, {pipeline_mode = #tpu.pipeline_mode<synchronous>, transform_indices = @transform_9, window_bounds = array<i64: 1, 128>}, {pipeline_mode = #tpu.pipeline_mode<synchronous>, transform_indices = @transform_10, window_bounds = array<i64: 1, 64>}, {pipeline_mode = #tpu.pipeline_mode<synchronous>, transform_indices = @transform_11, window_bounds = array<i64: 1, 64>}, {pipeline_mode = #tpu.pipeline_mode<synchronous>, transform_indices = @transform_12, window_bounds = array<i64: 2, 16, 128>}]} {
    %0 = tpu.iota {dimensions = array<i32: 0>} : vector<32x1xi32>
    %c16_i32 = arith.constant 16 : i32
    %c0_i32 = arith.constant 0 : i32
    %1 = arith.cmpi eq, %c16_i32, %c0_i32 : i32
    %c1_i32 = arith.constant 1 : i32
    %2 = arith.select %1, %c1_i32, %c16_i32 : i32
    %3 = vector.broadcast %2 : i32 to vector<32x1xi32>
    %4 = arith.remsi %0, %3 : vector<32x1xi32>
    %c0_i32_0 = arith.constant 0 : i32
    %5 = vector.broadcast %c0_i32_0 : i32 to vector<32x1xi32>
    %6 = arith.cmpi ne, %4, %5 : vector<32x1xi32>
    %c0_i32_1 = arith.constant 0 : i32
    %7 = vector.broadcast %c0_i32_1 : i32 to vector<32x1xi32>
    %8 = arith.cmpi slt, %4, %7 : vector<32x1xi32>
    %c0_i32_2 = arith.constant 0 : i32
    %9 = arith.cmpi slt, %2, %c0_i32_2 : i32
    %10 = vector.broadcast %9 : i1 to vector<32x1xi1>
    %11 = vector.broadcast %10 : vector<32x1xi1> to vector<32x1xi1>
    %12 = arith.xori %8, %11 : vector<32x1xi1>
    %13 = arith.andi %12, %6 : vector<32x1xi1>
    %14 = vector.broadcast %2 : i32 to vector<32x1xi32>
    %15 = arith.addi %4, %14 : vector<32x1xi32>
    %16 = arith.select %13, %15, %4 : vector<32x1xi1>, vector<32x1xi32>
    %c0_i32_3 = arith.constant 0 : i32
    %17 = vector.broadcast %c0_i32_3 : i32 to vector<32x1xi32>
    %18 = arith.cmpi ne, %16, %17 : vector<32x1xi32>
    %c15_i32 = arith.constant 15 : i32
    %19 = vector.broadcast %c15_i32 : i32 to vector<32x1xi32>
    %20 = arith.cmpi ne, %16, %19 : vector<32x1xi32>
    %c0 = arith.constant 0 : index
    %c0_4 = arith.constant 0 : index
    %c0_5 = arith.constant 0 : index
    %21 = vector.load %arg1[%c0, %c0_4, %c0_5] : memref<2x16x64xf32, #tpu.memory_space<vmem>>, vector<2x16x64xf32>
    %22 = vector.shape_cast %21 : vector<2x16x64xf32> to vector<32x64xf32>
    %c0_6 = arith.constant 0 : index
    %c0_7 = arith.constant 0 : index
    %23 = vector.load %arg2[%c0_6, %c0_7] : memref<1x64xf32, #tpu.memory_space<vmem>>, vector<1x64xf32>
    %24 = vector.broadcast %23 : vector<1x64xf32> to vector<32x64xf32>
    %25 = arith.mulf %22, %24 : vector<32x64xf32>
    %c0_8 = arith.constant 0 : index
    %c0_9 = arith.constant 0 : index
    %26 = vector.load %arg3[%c0_8, %c0_9] : memref<1x64xf32, #tpu.memory_space<vmem>>, vector<1x64xf32>
    %27 = vector.broadcast %26 : vector<1x64xf32> to vector<32x64xf32>
    %28 = arith.addf %25, %27 : vector<32x64xf32>
    %cst = arith.constant 0.000000e+00 : f32
    %29 = vector.broadcast %cst : f32 to vector<32x64xf32>
    %30 = arith.cmpf oge, %28, %29 : vector<32x64xf32>
    %cst_10 = arith.constant 2.000000e-01 : f32
    %31 = vector.broadcast %cst_10 : f32 to vector<32x64xf32>
    %32 = arith.mulf %31, %28 : vector<32x64xf32>
    %33 = arith.select %30, %28, %32 : vector<32x64xi1>, vector<32x64xf32>
    %c0_11 = arith.constant 0 : index
    %c0_12 = arith.constant 0 : index
    %34 = vector.load %arg5[%c0_11, %c0_12] : memref<1x64xf32, #tpu.memory_space<vmem>>, vector<1x64xf32>
    %c1_i32_13 = arith.constant 1 : i32
    %35 = tpu.dynamic_rotate %33 by %c1_i32_13 dim 0 : vector<32x64xf32>, i32 -> vector<32x64xf32>
    %cst_14 = arith.constant 0.000000e+00 : f32
    %36 = vector.shape_cast %18 : vector<32x1xi1> to vector<32x1xi1>
    %37 = vector.broadcast %36 : vector<32x1xi1> to vector<32x64xi1>
    %38 = vector.broadcast %cst_14 : f32 to vector<32x64xf32>
    %39 = arith.select %37, %35, %38 : vector<32x64xi1>, vector<32x64xf32>
    %c31_i32 = arith.constant 31 : i32
    %40 = tpu.dynamic_rotate %33 by %c31_i32 dim 0 : vector<32x64xf32>, i32 -> vector<32x64xf32>
    %cst_15 = arith.constant 0.000000e+00 : f32
    %41 = vector.shape_cast %20 : vector<32x1xi1> to vector<32x1xi1>
    %42 = vector.broadcast %41 : vector<32x1xi1> to vector<32x64xi1>
    %43 = vector.broadcast %cst_15 : f32 to vector<32x64xf32>
    %44 = arith.select %42, %40, %43 : vector<32x64xi1>, vector<32x64xf32>
    %45 = tpu.concatenate %39, %33, %44 in 1 : vector<32x64xf32>, vector<32x64xf32>, vector<32x64xf32> -> vector<32x192xf32>
    %46 = arith.truncf %45 : vector<32x192xf32> to vector<32x192xbf16>
    %c0_16 = arith.constant 0 : index
    %c0_17 = arith.constant 0 : index
    %47 = vector.load %arg4[%c0_16, %c0_17] : memref<192x64xbf16, #tpu.memory_space<vmem>>, vector<192x64xbf16>
    %cst_18 = arith.constant dense<0.000000e+00> : vector<32x64xf32>
    %48 = tpu.matmul %46, %47, %cst_18 {dimension_numbers = #tpu.dot_dimension_numbers<[1], [0], [0], [1], [0, 0, 1, 1], [], []>} : vector<32x192xbf16>, vector<192x64xbf16>, vector<32x64xf32> -> vector<32x64xf32>
    %49 = vector.broadcast %34 : vector<1x64xf32> to vector<32x64xf32>
    %50 = arith.addf %49, %48 : vector<32x64xf32>
    %cst_19 = arith.constant dense<0.000000e+00> : vector<64xf32>
    %51 = vector.multi_reduction <add>, %50, %cst_19 [0] : vector<32x64xf32> to vector<64xf32>
    %52 = vector.shape_cast %51 : vector<64xf32> to vector<1x64xf32>
    %53 = arith.mulf %50, %50 : vector<32x64xf32>
    %cst_20 = arith.constant dense<0.000000e+00> : vector<64xf32>
    %54 = vector.multi_reduction <add>, %53, %cst_20 [0] : vector<32x64xf32> to vector<64xf32>
    %55 = vector.shape_cast %54 : vector<64xf32> to vector<1x64xf32>
    %56 = tpu.concatenate %52, %55 in 0 : vector<1x64xf32>, vector<1x64xf32> -> vector<2x64xf32>
    %c0_21 = arith.constant 0 : index
    %c0_22 = arith.constant 0 : index
    %57 = vector.load %arg8[%c0_21, %c0_22] : memref<64x64xf32, #tpu.memory_space<vmem>>, vector<64x64xf32>
    %cst_23 = arith.constant dense<0.000000e+00> : vector<2x64xf32>
    %58 = tpu.matmul %56, %57, %cst_23 {dimension_numbers = #tpu.dot_dimension_numbers<[1], [0], [0], [1], [0, 0, 1, 1], [], []>} : vector<2x64xf32>, vector<64x64xf32>, vector<2x64xf32> -> vector<2x64xf32>
    %59 = vector.extract_strided_slice %58 {offsets = [0, 0], sizes = [1, 64], strides = [1, 1]} : vector<2x64xf32> to vector<1x64xf32>
    %60 = vector.extract_strided_slice %58 {offsets = [1, 0], sizes = [1, 64], strides = [1, 1]} : vector<2x64xf32> to vector<1x64xf32>
    %61 = arith.mulf %59, %59 : vector<1x64xf32>
    %62 = arith.subf %60, %61 : vector<1x64xf32>
    %cst_24 = arith.constant 9.99999974E-6 : f32
    %63 = vector.broadcast %cst_24 : f32 to vector<1x64xf32>
    %64 = arith.addf %62, %63 : vector<1x64xf32>
    %65 = math.rsqrt %64 : vector<1x64xf32>
    %66 = vector.broadcast %59 : vector<1x64xf32> to vector<32x64xf32>
    %67 = arith.subf %50, %66 : vector<32x64xf32>
    %c0_25 = arith.constant 0 : index
    %c0_26 = arith.constant 0 : index
    %68 = vector.load %arg6[%c0_25, %c0_26] : memref<1x64xf32, #tpu.memory_space<vmem>>, vector<1x64xf32>
    %69 = arith.mulf %68, %65 : vector<1x64xf32>
    %70 = vector.broadcast %69 : vector<1x64xf32> to vector<32x64xf32>
    %71 = arith.mulf %67, %70 : vector<32x64xf32>
    %c0_27 = arith.constant 0 : index
    %c0_28 = arith.constant 0 : index
    %72 = vector.load %arg7[%c0_27, %c0_28] : memref<1x64xf32, #tpu.memory_space<vmem>>, vector<1x64xf32>
    %73 = vector.broadcast %72 : vector<1x64xf32> to vector<32x64xf32>
    %74 = arith.addf %71, %73 : vector<32x64xf32>
    %cst_29 = arith.constant 0.000000e+00 : f32
    %75 = vector.broadcast %cst_29 : f32 to vector<32x64xf32>
    %76 = arith.cmpf oge, %74, %75 : vector<32x64xf32>
    %cst_30 = arith.constant 2.000000e-01 : f32
    %77 = vector.broadcast %cst_30 : f32 to vector<32x64xf32>
    %78 = arith.mulf %77, %74 : vector<32x64xf32>
    %79 = arith.select %76, %74, %78 : vector<32x64xi1>, vector<32x64xf32>
    %c1_i32_31 = arith.constant 1 : i32
    %80 = tpu.dynamic_rotate %79 by %c1_i32_31 dim 0 : vector<32x64xf32>, i32 -> vector<32x64xf32>
    %cst_32 = arith.constant 0.000000e+00 : f32
    %81 = vector.shape_cast %18 : vector<32x1xi1> to vector<32x1xi1>
    %82 = vector.broadcast %81 : vector<32x1xi1> to vector<32x64xi1>
    %83 = vector.broadcast %cst_32 : f32 to vector<32x64xf32>
    %84 = arith.select %82, %80, %83 : vector<32x64xi1>, vector<32x64xf32>
    %c31_i32_33 = arith.constant 31 : i32
    %85 = tpu.dynamic_rotate %79 by %c31_i32_33 dim 0 : vector<32x64xf32>, i32 -> vector<32x64xf32>
    %cst_34 = arith.constant 0.000000e+00 : f32
    %86 = vector.shape_cast %20 : vector<32x1xi1> to vector<32x1xi1>
    %87 = vector.broadcast %86 : vector<32x1xi1> to vector<32x64xi1>
    %88 = vector.broadcast %cst_34 : f32 to vector<32x64xf32>
    %89 = arith.select %87, %85, %88 : vector<32x64xi1>, vector<32x64xf32>
    %90 = tpu.concatenate %84, %79, %89 in 1 : vector<32x64xf32>, vector<32x64xf32>, vector<32x64xf32> -> vector<32x192xf32>
    %c0_35 = arith.constant 0 : index
    %c0_36 = arith.constant 0 : index
    %91 = vector.load %arg11[%c0_35, %c0_36] : memref<1x64xf32, #tpu.memory_space<vmem>>, vector<1x64xf32>
    %92 = vector.broadcast %91 : vector<1x64xf32> to vector<32x64xf32>
    %93 = arith.mulf %22, %92 : vector<32x64xf32>
    %c0_37 = arith.constant 0 : index
    %c0_38 = arith.constant 0 : index
    %94 = vector.load %arg12[%c0_37, %c0_38] : memref<1x64xf32, #tpu.memory_space<vmem>>, vector<1x64xf32>
    %95 = vector.broadcast %94 : vector<1x64xf32> to vector<32x64xf32>
    %96 = arith.addf %93, %95 : vector<32x64xf32>
    %97 = tpu.concatenate %90, %96 in 1 : vector<32x192xf32>, vector<32x64xf32> -> vector<32x256xf32>
    %c0_39 = arith.constant 0 : index
    %c0_40 = arith.constant 0 : index
    %98 = vector.load %arg10[%c0_39, %c0_40] : memref<1x128xf32, #tpu.memory_space<vmem>>, vector<1x128xf32>
    %99 = arith.truncf %97 : vector<32x256xf32> to vector<32x256xbf16>
    %c0_41 = arith.constant 0 : index
    %c0_42 = arith.constant 0 : index
    %100 = vector.load %arg9[%c0_41, %c0_42] : memref<256x128xbf16, #tpu.memory_space<vmem>>, vector<256x128xbf16>
    %cst_43 = arith.constant dense<0.000000e+00> : vector<32x128xf32>
    %101 = tpu.matmul %99, %100, %cst_43 {dimension_numbers = #tpu.dot_dimension_numbers<[1], [0], [0], [1], [0, 0, 1, 1], [], []>} : vector<32x256xbf16>, vector<256x128xbf16>, vector<32x128xf32> -> vector<32x128xf32>
    %102 = vector.broadcast %98 : vector<1x128xf32> to vector<32x128xf32>
    %103 = arith.addf %102, %101 : vector<32x128xf32>
    %104 = vector.shape_cast %103 : vector<32x128xf32> to vector<2x16x128xf32>
    %c0_44 = arith.constant 0 : index
    %c0_45 = arith.constant 0 : index
    %c0_46 = arith.constant 0 : index
    %105 = vector.load %arg13[%c0_44, %c0_45, %c0_46] : memref<2x16x128xf32, #tpu.memory_space<vmem>>, vector<2x16x128xf32>
    tpu.vector_store %arg13[%c0_44, %c0_45, %c0_46], %104 {strides = array<i32>} : memref<2x16x128xf32, #tpu.memory_space<vmem>>, vector<2x16x128xf32>,
    return
  }
  func.func @transform_0(%arg0: i32) -> (i32, i32, i32) {
    %c0_i32 = arith.constant 0 : i32
    %c0_i32_0 = arith.constant 0 : i32
    %c0_i32_1 = arith.constant 0 : i32
    %c0_i32_2 = arith.constant 0 : i32
    return %c0_i32, %c0_i32_0, %c0_i32_1 : i32, i32, i32
  }
  func.func @transform_1(%arg0: i32) -> (i32, i32) {
    %c0_i32 = arith.constant 0 : i32
    %c0_i32_0 = arith.constant 0 : i32
    %c0_i32_1 = arith.constant 0 : i32
    return %c0_i32, %c0_i32_0 : i32, i32
  }
  func.func @transform_2(%arg0: i32) -> (i32, i32) {
    %c0_i32 = arith.constant 0 : i32
    %c0_i32_0 = arith.constant 0 : i32
    %c0_i32_1 = arith.constant 0 : i32
    return %c0_i32, %c0_i32_0 : i32, i32
  }
  func.func @transform_3(%arg0: i32) -> (i32, i32) {
    %c0_i32 = arith.constant 0 : i32
    %c0_i32_0 = arith.constant 0 : i32
    %c0_i32_1 = arith.constant 0 : i32
    return %c0_i32, %c0_i32_0 : i32, i32
  }
  func.func @transform_4(%arg0: i32) -> (i32, i32) {
    %c0_i32 = arith.constant 0 : i32
    %c0_i32_0 = arith.constant 0 : i32
    %c0_i32_1 = arith.constant 0 : i32
    return %c0_i32, %c0_i32_0 : i32, i32
  }
  func.func @transform_5(%arg0: i32) -> (i32, i32) {
    %c0_i32 = arith.constant 0 : i32
    %c0_i32_0 = arith.constant 0 : i32
    %c0_i32_1 = arith.constant 0 : i32
    return %c0_i32, %c0_i32_0 : i32, i32
  }
  func.func @transform_6(%arg0: i32) -> (i32, i32) {
    %c0_i32 = arith.constant 0 : i32
    %c0_i32_0 = arith.constant 0 : i32
    %c0_i32_1 = arith.constant 0 : i32
    return %c0_i32, %c0_i32_0 : i32, i32
  }
  func.func @transform_7(%arg0: i32) -> (i32, i32) {
    %c0_i32 = arith.constant 0 : i32
    %c0_i32_0 = arith.constant 0 : i32
    %c0_i32_1 = arith.constant 0 : i32
    return %c0_i32, %c0_i32_0 : i32, i32
  }
  func.func @transform_8(%arg0: i32) -> (i32, i32) {
    %c0_i32 = arith.constant 0 : i32
    %c0_i32_0 = arith.constant 0 : i32
    %c0_i32_1 = arith.constant 0 : i32
    return %c0_i32, %c0_i32_0 : i32, i32
  }
  func.func @transform_9(%arg0: i32) -> (i32, i32) {
    %c0_i32 = arith.constant 0 : i32
    %c0_i32_0 = arith.constant 0 : i32
    %c0_i32_1 = arith.constant 0 : i32
    return %c0_i32, %c0_i32_0 : i32, i32
  }
  func.func @transform_10(%arg0: i32) -> (i32, i32) {
    %c0_i32 = arith.constant 0 : i32
    %c0_i32_0 = arith.constant 0 : i32
    %c0_i32_1 = arith.constant 0 : i32
    return %c0_i32, %c0_i32_0 : i32, i32
  }
  func.func @transform_11(%arg0: i32) -> (i32, i32) {
    %c0_i32 = arith.constant 0 : i32
    %c0_i32_0 = arith.constant 0 : i32
    %c0_i32_1 = arith.constant 0 : i32
    return %c0_i32, %c0_i32_0 : i32, i32
  }
  func.func @transform_12(%arg0: i32) -> (i32, i32, i32) {
    %c0_i32 = arith.constant 0 : i32
    %c0_i32_0 = arith.constant 0 : i32
    %c0_i32_1 = arith.constant 0 : i32
    %c0_i32_2 = arith.constant 0 : i32
    return %c0_i32, %c0_i32_0, %c0_i32_1 : i32, i32, i32
  }
}

</mosaic_0001>

<llo_original>
// kernel: tpu_custom_call.1
$region0: #{tpu_custom_call.1}
  #allocation0 [shape = 'u32[]', space=smem, size = 0x4, offset = 0x4, fixed_abs, tag = 'smem constant byte address 0x4 - core index']
  #allocation1 [shape = 'u32[72,128]{1,0:T(1,128)}', space=vmem, size = 0x9000, scoped, tag = 'internal scratch']
  %s0 = inlined_call_operand.vmem [shape: f32[2,16,64], index: 0, kind: input, shape index: {}]
  %s1 = inlined_call_operand.vmem [shape: f32[1,64], index: 1, kind: input, shape index: {}]
  %s2 = inlined_call_operand.vmem [shape: f32[1,64], index: 2, kind: input, shape index: {}]
  %s3 = inlined_call_operand.vmem [shape: bf16[192,64], index: 3, kind: input, shape index: {}]
  %s4 = inlined_call_operand.vmem [shape: f32[1,64], index: 4, kind: input, shape index: {}]
  %s5 = inlined_call_operand.vmem [shape: f32[1,64], index: 5, kind: input, shape index: {}]
  %s6 = inlined_call_operand.vmem [shape: f32[1,64], index: 6, kind: input, shape index: {}]
  %s7 = inlined_call_operand.hbm [shape: f32[64,64], index: 7, kind: input, shape index: {}]
  %s8 = inlined_call_operand.vmem [shape: bf16[256,128], index: 8, kind: input, shape index: {}]
  %s9 = inlined_call_operand.vmem [shape: f32[1,128], index: 9, kind: input, shape index: {}]
  %s10 = inlined_call_operand.vmem [shape: f32[1,64], index: 10, kind: input, shape index: {}]
  %s11 = inlined_call_operand.vmem [shape: f32[1,64], index: 11, kind: input, shape index: {}]
  %s12 = inlined_call_operand.hbm [shape: f32[2,16,128], index: 12, kind: output, shape index: {}]
  %s13 = sld [smem:[#allocation0]]
  $region62: #{tpu_custom_call.1} parent=0
    _
  %s15 = ssub.s32 1, %s13
  %s16 = scalar_select 0, %s15, %s13
  $region1: #{tpu_custom_call.1} parent=0
    #allocation2 [shape = 'u8[32768]{0}', space=vmem, size = 0x8000, scoped, tag = 'input window, operand 7, single buffered']
    #allocation3 [shape = 's32[1]{0}', space=sflag, size = 0x4, scoped, tag = 'scoped memory for tpu_custom_call.1']
    #allocation4 [shape = 's32[1]{0}', space=sflag, size = 0x4, scoped, tag = 'scoped memory for tpu_custom_call.1']
    #allocation5 [shape = 'u8[16384]{0}', space=vmem, size = 0x4000, scoped, tag = 'output window, operand 0, single buffered']
    %17 = vsyncpa [#allocation3], 0
    %18 = vsyncpa [#allocation4], 0
    // Predicated region
    $region2: #{tpu_custom_call.1} parent=1 // pred_check
      _
    $region3: #{tpu_custom_call.1} parent=1 // pred_check_branch
      %20 = sbr.rel (0) target = $region5
    $region4: #{tpu_custom_call.1} parent=1 // pred_region
      _
    $region5: #{tpu_custom_call.1} parent=1 // pred_fallthru
      _
    // Predicated region
    $region6: #{tpu_custom_call.1} parent=1 // pred_check
      _
    $region7: #{tpu_custom_call.1} parent=1 // pred_check_branch
      %22 = sbr.rel (0) target = $region9
    $region8: #{tpu_custom_call.1} parent=1 // pred_region
      _
    $region9: #{tpu_custom_call.1} parent=1 // pred_fallthru
      _
    // Predicated region
    $region10: #{tpu_custom_call.1} parent=1 // pred_check
      _
    $region11: #{tpu_custom_call.1} parent=1 // pred_check_branch
      %24 = sbr.rel (0) target = $region13
    $region12: #{tpu_custom_call.1} parent=1 // pred_region
      _
    $region13: #{tpu_custom_call.1} parent=1 // pred_fallthru
      _
    // Predicated region
    $region14: #{tpu_custom_call.1} parent=1 // pred_check
      _
    $region15: #{tpu_custom_call.1} parent=1 // pred_check_branch
      %26 = sbr.rel (0) target = $region17
    $region16: #{tpu_custom_call.1} parent=1 // pred_region
      _
    $region17: #{tpu_custom_call.1} parent=1 // pred_fallthru
      _
    // Predicated region
    $region18: #{tpu_custom_call.1} parent=1 // pred_check
      _
    $region19: #{tpu_custom_call.1} parent=1 // pred_check_branch
      %28 = sbr.rel (0) target = $region21
    $region20: #{tpu_custom_call.1} parent=1 // pred_region
      _
    $region21: #{tpu_custom_call.1} parent=1 // pred_fallthru
      _
    // Predicated region
    $region22: #{tpu_custom_call.1} parent=1 // pred_check
      _
    $region23: #{tpu_custom_call.1} parent=1 // pred_check_branch
      %30 = sbr.rel (0) target = $region25
    $region24: #{tpu_custom_call.1} parent=1 // pred_region
      _
    $region25: #{tpu_custom_call.1} parent=1 // pred_fallthru
      _
    // Predicated region
    $region26: #{tpu_custom_call.1} parent=1 // pred_check
      _
    $region27: #{tpu_custom_call.1} parent=1 // pred_check_branch
      %32 = sbr.rel (0) target = $region29
    $region28: #{tpu_custom_call.1} parent=1 // pred_region
      _
    $region29: #{tpu_custom_call.1} parent=1 // pred_fallthru
      _
    // Predicated region
    $region30: #{tpu_custom_call.1} parent=1 // pred_check
      _
    $region31: #{tpu_custom_call.1} parent=1 // pred_check_branch
      %34 = sbr.rel (0) target = $region33
    $region32: #{tpu_custom_call.1} parent=1 // pred_region
      %36 = vsyncadd [#allocation3], 0
      %s37 = sshll.u32 %s7, 4
      %s38 = int_to_ptr.hbm [resolvable:$true] %s37
      %s39 = sshll.u32 [#allocation2], 4
      %s40 = int_to_ptr.vmem [resolvable:$true] %s39
      %45 = dma.hbm_to_vmem [thread:$0]  %s38, 1024, %s40, [#allocation3], 128, 128, 8
    $region33: #{tpu_custom_call.1} parent=1 // pred_fallthru
      _
    // Predicated region
    $region34: #{tpu_custom_call.1} parent=1 // pred_check
      _
    $region35: #{tpu_custom_call.1} parent=1 // pred_check_branch
      %47 = sbr.rel (0) target = $region37
    $region36: #{tpu_custom_call.1} parent=1 // pred_region
      _
    $region37: #{tpu_custom_call.1} parent=1 // pred_fallthru
      _
    // Predicated region
    $region38: #{tpu_custom_call.1} parent=1 // pred_check
      _
    $region39: #{tpu_custom_call.1} parent=1 // pred_check_branch
      %49 = sbr.rel (0) target = $region41
    $region40: #{tpu_custom_call.1} parent=1 // pred_region
      _
    $region41: #{tpu_custom_call.1} parent=1 // pred_fallthru
      _
    // Predicated region
    $region42: #{tpu_custom_call.1} parent=1 // pred_check
      _
    $region43: #{tpu_custom_call.1} parent=1 // pred_check_branch
      %51 = sbr.rel (0) target = $region45
    $region44: #{tpu_custom_call.1} parent=1 // pred_region
      _
    $region45: #{tpu_custom_call.1} parent=1 // pred_fallthru
      _
    // Predicated region
    $region46: #{tpu_custom_call.1} parent=1 // pred_check
      _
    $region47: #{tpu_custom_call.1} parent=1 // pred_check_branch
      %53 = sbr.rel (0) target = $region49
    $region48: #{tpu_custom_call.1} parent=1 // pred_region
      _
    $region49: #{tpu_custom_call.1} parent=1 // pred_fallthru
      _
    // Predicated region
    $region50: #{tpu_custom_call.1} parent=1 // pred_check
      _
    $region51: #{tpu_custom_call.1} parent=1 // pred_check_branch
      %55 = sbr.rel (0) target = $region53
    $region52: #{tpu_custom_call.1} parent=1 // pred_region
      %57 = dma.done [#allocation3], 1024
    $region53: #{tpu_custom_call.1} parent=1 // pred_fallthru
      _
    %v59 = vlaneseq
    %v60 = vshrl.u32 %v59, 7
    %v61 = vadd.s32 %v60, 8
    %v62 = vadd.s32 %v60, 16
    %v63 = vadd.s32 %v60, 24
    %vm64 = vcmp.lt.s32.totalorder %v60, 0
    %v65 = vsub.s32 0, %v60
    %v66 = vsel %vm64, %v65, %v60
    %v67 = vshrl.u32 %v66, 4
    %v68 = vand.u32 %v66, 15
    %v69 = vsub.s32 0, %v68
    %v70 = vsel %vm64, %v69, %v68
    %vm71 = vcmp.lt.s32.totalorder %v61, 0
    %v72 = vsub.s32 0, %v61
    %v73 = vsel %vm71, %v72, %v61
    %v74 = vshrl.u32 %v73, 4
    %v75 = vand.u32 %v73, 15
    %v76 = vsub.s32 0, %v75
    %v77 = vsel %vm71, %v76, %v75
    %vm78 = vcmp.lt.s32.totalorder %v62, 0
    %v79 = vsub.s32 0, %v62
    %v80 = vsel %vm78, %v79, %v62
    %v81 = vshrl.u32 %v80, 4
    %v82 = vand.u32 %v80, 15
    %v83 = vsub.s32 0, %v82
    %v84 = vsel %vm78, %v83, %v82
    %vm85 = vcmp.lt.s32.totalorder %v63, 0
    %v86 = vsub.s32 0, %v63
    %v87 = vsel %vm85, %v86, %v63
    %v88 = vshrl.u32 %v87, 4
    %v89 = vand.u32 %v87, 15
    %v90 = vsub.s32 0, %v89
    %v91 = vsel %vm85, %v90, %v89
    %vm92 = vcmp.ne.s32.totalorder %v70, 0
    %vm93 = vcmp.ne.s32.totalorder %v77, 0
    %vm94 = vcmp.ne.s32.totalorder %v84, 0
    %vm95 = vcmp.ne.s32.totalorder %v91, 0
    %vm96 = vcmp.lt.s32.totalorder %v70, 0
    %vm97 = vcmp.lt.s32.totalorder %v77, 0
    %vm98 = vcmp.lt.s32.totalorder %v84, 0
    %vm99 = vcmp.lt.s32.totalorder %v91, 0
    %vm100 = vmand %vm96, %vm92
    %vm101 = vmand %vm97, %vm93
    %vm102 = vmand %vm98, %vm94
    %vm103 = vmand %vm99, %vm95
    %v104 = vadd.s32 %v70, 16
    %v105 = vadd.s32 %v77, 16
    %v106 = vadd.s32 %v84, 16
    %v107 = vadd.s32 %v91, 16
    %v108 = vsel %vm100, %v104, %v70
    %v109 = vsel %vm101, %v105, %v77
    %v110 = vsel %vm102, %v106, %v84
    %v111 = vsel %vm103, %v107, %v91
    %vm112 = vcmp.ne.s32.totalorder %v108, 0
    %vm113 = vcmp.ne.s32.totalorder %v109, 0
    %vm114 = vcmp.ne.s32.totalorder %v110, 0
    %vm115 = vcmp.ne.s32.totalorder %v111, 0
    %vm116 = vcmp.ne.s32.totalorder %v108, 15
    %vm117 = vcmp.ne.s32.totalorder %v109, 15
    %vm118 = vcmp.ne.s32.totalorder %v110, 15
    %vm119 = vcmp.ne.s32.totalorder %v111, 15
    %v120 = vld [vmem:[%s0] sm:$0xff]
    %v121 = vld [vmem:[%s0 + $0x8] sm:$0xff]
    %v122 = vld [vmem:[%s0 + $0x10] sm:$0xff]
    %v123 = vld [vmem:[%s0 + $0x18] sm:$0xff]
    %v124 = vld [vmem:[%s1] sm:$0x1]
    %v126 = vperm.slane %v124, 0
    %v128 = vmul.f32 %v120, %v126
    %v129 = vmul.f32 %v121, %v126
    %v130 = vmul.f32 %v122, %v126
    %v131 = vmul.f32 %v123, %v126
    %v132 = vld [vmem:[%s2] sm:$0x1]
    %v134 = vperm.slane %v132, 0
    %v136 = vadd.f32 %v128, %v134
    %v137 = vadd.f32 %v129, %v134
    %v138 = vadd.f32 %v130, %v134
    %v139 = vadd.f32 %v131, %v134
    %vm140 = vcmp.ge.f32.partialorder %v136, 0.0
    %vm141 = vcmp.ge.f32.partialorder %v137, 0.0
    %vm142 = vcmp.ge.f32.partialorder %v138, 0.0
    %vm143 = vcmp.ge.f32.partialorder %v139, 0.0
    %v144 = vmul.f32 %v136, 0.2
    %v145 = vmul.f32 %v137, 0.2
    %v146 = vmul.f32 %v138, 0.2
    %v147 = vmul.f32 %v139, 0.2
    %v148 = vsel %vm140, %v136, %v144
    %v149 = vsel %vm141, %v137, %v145
    %v150 = vsel %vm142, %v138, %v146
    %v151 = vsel %vm143, %v139, %v147
    %v152 = vld [vmem:[%s4] sm:$0x1]
    %v153 = vrot.slane %v148, 7
    %v154 = vrot.slane %v149, 7
    %v155 = vrot.slane %v150, 7
    %v156 = vrot.slane %v151, 7
    %vm157 = vcmp.lt.s32.totalorder %v60, 1
    %v158 = vsel %vm157, %v155, %v156
    %v159 = vsel %vm157, %v154, %v155
    %v160 = vsel %vm157, %v153, %v154
    %v161 = vsel %vm157, %v156, %v153
    %v162 = vsel %vm112, 1, 0
    %v163 = vsel %vm113, 1, 0
    %v164 = vsel %vm114, 1, 0
    %v165 = vsel %vm115, 1, 0
    %vm166 = vcmp.eq.s32.totalorder %v162, 1
    %vm167 = vcmp.eq.s32.totalorder %v163, 1
    %vm168 = vcmp.eq.s32.totalorder %v164, 1
    %vm169 = vcmp.eq.s32.totalorder %v165, 1
    %v170 = vsel %vm166, %v161, 0.0
    %v171 = vsel %vm167, %v160, 0.0
    %v172 = vsel %vm168, %v159, 0.0
    %v173 = vsel %vm169, %v158, 0.0
    %v174 = vrot.slane %v148, 1
    %v175 = vrot.slane %v149, 1
    %v176 = vrot.slane %v150, 1
    %v177 = vrot.slane %v151, 1
    %vm178 = vcmp.lt.s32.totalorder %v60, 7
    %v179 = vsel %vm178, %v176, %v177
    %v180 = vsel %vm178, %v175, %v176
    %v181 = vsel %vm178, %v174, %v175
    %v182 = vsel %vm178, %v177, %v174
    %v183 = vsel %vm116, 1, 0
    %v184 = vsel %vm117, 1, 0
    %v185 = vsel %vm118, 1, 0
    %v186 = vsel %vm119, 1, 0
    %vm187 = vcmp.eq.s32.totalorder %v183, 1
    %vm188 = vcmp.eq.s32.totalorder %v184, 1
    %vm189 = vcmp.eq.s32.totalorder %v185, 1
    %vm190 = vcmp.eq.s32.totalorder %v186, 1
    %v191 = vsel %vm187, %v181, 0.0
    %v192 = vsel %vm188, %v180, 0.0
    %v193 = vsel %vm189, %v179, 0.0
    %v194 = vsel %vm190, %v182, 0.0
    %199 = vrot.lane.b32.xlu0 %v148, 64
    %v200 = vpop.permute.xlu0 %199
    %201 = vrot.lane.b32.xlu0 %v149, 64
    %v202 = vpop.permute.xlu0 %201
    %203 = vrot.lane.b32.xlu0 %v150, 64
    %v204 = vpop.permute.xlu0 %203
    %205 = vrot.lane.b32.xlu0 %v151, 64
    %v206 = vpop.permute.xlu0 %205
    %vm211 = vcmask 523264
    %v212 = vsel %vm211, %v170, %v200
    %v213 = vsel %vm211, %v171, %v202
    %v214 = vsel %vm211, %v172, %v204
    %v215 = vsel %vm211, %v173, %v206
    %v216 = vpack.c.bf16 %v213, %v212
    %v217 = vpack.c.bf16 %v192, %v191
    %v218 = vpack.c.bf16 %v215, %v214
    %v219 = vpack.c.bf16 %v194, %v193
    %v220 = vld [vmem:[%s3] sm:$0xf]
    %v221 = vld [vmem:[%s3 + $0x4] sm:$0xf]
    %v222 = vld [vmem:[%s3 + $0x8] sm:$0xf]
    %v223 = vld [vmem:[%s3 + $0xc] sm:$0xf]
    %v224 = vld [vmem:[%s3 + $0x10] sm:$0xf]
    %v225 = vld [vmem:[%s3 + $0x14] sm:$0xf]
    %v226 = vld [vmem:[%s3 + $0x18] sm:$0xf]
    %v227 = vld [vmem:[%s3 + $0x1c] sm:$0xf]
    %v228 = vld [vmem:[%s3 + $0x20] sm:$0xf]
    %v229 = vld [vmem:[%s3 + $0x24] sm:$0xf]
    %v230 = vld [vmem:[%s3 + $0x28] sm:$0xf]
    %v231 = vld [vmem:[%s3 + $0x2c] sm:$0xf]
    %v232 = vld [vmem:[%s3 + $0x30] sm:$0xf]
    %v233 = vld [vmem:[%s3 + $0x34] sm:$0xf]
    %v234 = vld [vmem:[%s3 + $0x38] sm:$0xf]
    %v235 = vld [vmem:[%s3 + $0x3c] sm:$0xf]
    %v236 = vld [vmem:[%s3 + $0x40] sm:$0xf]
    %v237 = vld [vmem:[%s3 + $0x44] sm:$0xf]
    %v238 = vld [vmem:[%s3 + $0x48] sm:$0xf]
    %v239 = vld [vmem:[%s3 + $0x4c] sm:$0xf]
    %v240 = vld [vmem:[%s3 + $0x50] sm:$0xf]
    %v241 = vld [vmem:[%s3 + $0x54] sm:$0xf]
    %v242 = vld [vmem:[%s3 + $0x58] sm:$0xf]
    %v243 = vld [vmem:[%s3 + $0x5c] sm:$0xf]
    %v268 = vunpack.c.l.b16 %v220
    %v269 = vunpack.c.l.b16 %v221
    %v270 = vunpack.c.l.b16 %v222
    %v271 = vunpack.c.l.b16 %v223
    %v272 = vunpack.c.l.b16 %v224
    %v273 = vunpack.c.l.b16 %v225
    %v274 = vunpack.c.l.b16 %v226
    %v275 = vunpack.c.l.b16 %v227
    %v276 = vunpack.c.l.b16 %v228
    %v277 = vunpack.c.l.b16 %v229
    %v278 = vunpack.c.l.b16 %v230
    %v279 = vunpack.c.l.b16 %v231
    %v280 = vunpack.c.l.b16 %v232
    %v281 = vunpack.c.l.b16 %v233
    %v282 = vunpack.c.l.b16 %v234
    %v283 = vunpack.c.l.b16 %v235
    %v284 = vunpack.c.l.b16 %v236
    %v285 = vunpack.c.l.b16 %v237
    %v286 = vunpack.c.l.b16 %v238
    %v287 = vunpack.c.l.b16 %v239
    %v288 = vunpack.c.l.b16 %v240
    %v289 = vunpack.c.l.b16 %v241
    %v290 = vunpack.c.l.b16 %v242
    %v291 = vunpack.c.l.b16 %v243
    %v292 = vpack.c.b16 %v269, %v268
    %v293 = vpack.c.b16 %v271, %v270
    %v294 = vpack.c.b16 %v273, %v272
    %v295 = vpack.c.b16 %v275, %v274
    %v296 = vpack.c.b16 %v277, %v276
    %v297 = vpack.c.b16 %v279, %v278
    %v298 = vpack.c.b16 %v281, %v280
    %v299 = vpack.c.b16 %v283, %v282
    %v300 = vpack.c.b16 %v285, %v284
    %v301 = vpack.c.b16 %v287, %v286
    %v302 = vpack.c.b16 %v289, %v288
    %v303 = vpack.c.b16 %v291, %v290
    %v317 = vsel %vm211, %v217, 0
    %v320 = vsel %vm211, %v219, 0
    %322 = vmatpush.bf16.msra.mxu0 %v299
    %323 = vmatpush.bf16.msra.mxu0 %v298
    %324 = vmatpush.bf16.msra.mxu0 %v297
    %325 = vmatpush.bf16.msra.mxu0 %v296
    %326 = vmatpush.bf16.msra.mxu0 %v295
    %327 = vmatpush.bf16.msra.mxu0 %v294
    %328 = vmatpush.bf16.msra.mxu0 %v293
    %329 = vmatpush.bf16.msra.mxu0 %v292
    %330 = vmatmul.bf16.gmra.mxu0 %v216
    %v331 = vpop.f32.mrf.mxu0
    %v332 = vadd.f32 0.0, %v331
    %v333 = vpop.f32.mrf.mxu0
    %v334 = vadd.f32 0.0, %v333
    %335 = vmatmul.bf16.gmra.mxu0 %v218
    %v336 = vpop.f32.mrf.mxu0
    %v337 = vadd.f32 0.0, %v336
    %v338 = vpop.f32.mrf.mxu0
    %v339 = vadd.f32 0.0, %v338
    %340 = vdwg.mxu0
    %341 = vmatpush.bf16.msra.mxu0 0
    %342 = vmatpush.bf16.msra.mxu0 0
    %343 = vmatpush.bf16.msra.mxu0 0
    %344 = vmatpush.bf16.msra.mxu0 0
    %345 = vmatpush.bf16.msra.mxu0 %v303
    %346 = vmatpush.bf16.msra.mxu0 %v302
    %347 = vmatpush.bf16.msra.mxu0 %v301
    %348 = vmatpush.bf16.msra.mxu0 %v300
    %349 = vmatmul.bf16.gmra.mxu0 %v317
    %v350 = vpop.f32.mrf.mxu0
    %v351 = vadd.f32 %v332, %v350
    %v352 = vpop.f32.mrf.mxu0
    %v353 = vadd.f32 %v334, %v352
    %354 = vmatmul.bf16.gmra.mxu0 %v320
    %v355 = vpop.f32.mrf.mxu0
    %v356 = vadd.f32 %v337, %v355
    %v357 = vpop.f32.mrf.mxu0
    %v358 = vadd.f32 %v339, %v357
    %359 = vdwg.mxu0
    %v361 = vperm.slane %v152, 0
    %v363 = vadd.f32 %v361, %v351
    %v364 = vadd.f32 %v361, %v353
    %v365 = vadd.f32 %v361, %v356
    %v366 = vadd.f32 %v361, %v358
    %v367 = vsel %vm211, %v363, 0.0
    %v368 = vsel %vm211, %v364, 0.0
    %v369 = vadd.f32 %v367, %v368
    %v370 = vsel %vm211, %v365, 0.0
    %v371 = vadd.f32 %v369, %v370
    %v372 = vsel %vm211, %v366, 0.0
    %v373 = vadd.f32 %v371, %v372
    %v374 = vrot.slane %v373, 4
    %v375 = vadd.f32 %v373, %v374
    %v376 = vrot.slane %v375, 2
    %v377 = vadd.f32 %v375, %v376
    %v378 = vrot.slane %v377, 1
    %v379 = vadd.f32 %v377, %v378
    %v380 = vmul.f32 %v363, %v363
    %v381 = vmul.f32 %v364, %v364
    %v382 = vmul.f32 %v365, %v365
    %v383 = vmul.f32 %v366, %v366
    %v384 = vsel %vm211, %v380, 0.0
    %v385 = vsel %vm211, %v381, 0.0
    %v386 = vadd.f32 %v384, %v385
    %v387 = vsel %vm211, %v382, 0.0
    %v388 = vadd.f32 %v386, %v387
    %v389 = vsel %vm211, %v383, 0.0
    %v390 = vadd.f32 %v388, %v389
    %v391 = vrot.slane %v390, 4
    %v392 = vadd.f32 %v390, %v391
    %v393 = vrot.slane %v392, 2
    %v394 = vadd.f32 %v392, %v393
    %v395 = vrot.slane %v394, 1
    %v396 = vadd.f32 %v394, %v395
    %vm397 = vcmask 1040384
    %v398 = vsel %vm397, %v379, %v396
    %v399 = vld [vmem:[#allocation2] sm:$0xff]
    %v400 = vld [vmem:[#allocation2 + $0x8] sm:$0xff]
    %v401 = vld [vmem:[#allocation2 + $0x10] sm:$0xff]
    %v402 = vld [vmem:[#allocation2 + $0x18] sm:$0xff]
    %v403 = vld [vmem:[#allocation2 + $0x20] sm:$0xff]
    %v404 = vld [vmem:[#allocation2 + $0x28] sm:$0xff]
    %v405 = vld [vmem:[#allocation2 + $0x30] sm:$0xff]
    %v406 = vld [vmem:[#allocation2 + $0x38] sm:$0xff]
    %v408 = vsel %vm211, %v398, 0
    %410 = vmatpush.msra.mxu0 0.0
    %411 = vmatpush.msra.mxu0 0.0
    %412 = vmatpush.msra.mxu0 0.0
    %413 = vmatpush.msra.mxu0 0.0
    %414 = vmatpush.msra.mxu0 0.0
    %415 = vmatpush.msra.mxu0 0.0
    %416 = vmatpush.msra.mxu0 0.0
    %417 = vmatpush.msra.mxu0 0.0
    %418 = vmatpush.msra.mxu0 %v406
    %419 = vmatpush.msra.mxu0 %v405
    %420 = vmatpush.msra.mxu0 %v404
    %421 = vmatpush.msra.mxu0 %v403
    %422 = vmatpush.msra.mxu0 %v402
    %423 = vmatpush.msra.mxu0 %v401
    %424 = vmatpush.msra.mxu0 %v400
    %425 = vmatpush.msra.mxu0 %v399
    %426 = vmatmul.f32.gmra.mxu0 %v408
    %v427 = vpop.f32.mrf.mxu0
    %v428 = vadd.f32 0.0, %v427
    %429 = vdwg.mxu0
    %v430 = vmul.f32 %v428, %v428
    %v432 = vrot.slane %v430, 7
    %v434 = vsub.f32 %v428, %v432
    %v435 = vadd.f32 %v434, 1e-05
    %v436 = vrsqrt.pop %v435
    %v437 = vmul.f32 %v436, %v435
    %v438 = vmul.f32 %v437, %v436
    %v439 = vmul.f32 0.5, %v438
    %v440 = vsub.f32 1.5, %v439
    %v441 = vmul.f32 %v436, %v440
    %vm442 = vweird.f32 %v435
    %vm443 = vweird.f32 %v436
    %vm444 = vmor %vm442, %vm443
    %v445 = vsel %vm444, %v436, %v441
    %v446 = vperm.slane %v428, 0
    %v447 = vsub.f32 %v363, %v446
    %v448 = vsub.f32 %v364, %v446
    %v449 = vsub.f32 %v365, %v446
    %v450 = vsub.f32 %v366, %v446
    %v451 = vld [vmem:[%s5] sm:$0x1]
    %453 = vst [vmem:[#allocation1] sm:$0xff] %v445
    %s454 = scalar_lea.vmem [#allocation1], 1
    %v455 = vld [vmem:[%s454] ss:$9 sm:$0xff]
    %v457 = vmul.f32 %v451, %v455
    %v459 = vperm.slane %v457, 0
    %v461 = vmul.f32 %v447, %v459
    %v462 = vmul.f32 %v448, %v459
    %v463 = vmul.f32 %v449, %v459
    %v464 = vmul.f32 %v450, %v459
    %v465 = vld [vmem:[%s6] sm:$0x1]
    %v467 = vperm.slane %v465, 0
    %v469 = vadd.f32 %v461, %v467
    %v470 = vadd.f32 %v462, %v467
    %v471 = vadd.f32 %v463, %v467
    %v472 = vadd.f32 %v464, %v467
    %vm473 = vcmp.ge.f32.partialorder %v469, 0.0
    %vm474 = vcmp.ge.f32.partialorder %v470, 0.0
    %vm475 = vcmp.ge.f32.partialorder %v471, 0.0
    %vm476 = vcmp.ge.f32.partialorder %v472, 0.0
    %v477 = vmul.f32 %v469, 0.2
    %v478 = vmul.f32 %v470, 0.2
    %v479 = vmul.f32 %v471, 0.2
    %v480 = vmul.f32 %v472, 0.2
    %v481 = vsel %vm473, %v469, %v477
    %v482 = vsel %vm474, %v470, %v478
    %v483 = vsel %vm475, %v471, %v479
    %v484 = vsel %vm476, %v472, %v480
    %v485 = vrot.slane %v481, 7
    %v486 = vrot.slane %v482, 7
    %v487 = vrot.slane %v483, 7
    %v488 = vrot.slane %v484, 7
    %v489 = vsel %vm157, %v487, %v488
    %v490 = vsel %vm157, %v486, %v487
    %v491 = vsel %vm157, %v485, %v486
    %v492 = vsel %vm157, %v488, %v485
    %v493 = vsel %vm166, %v492, 0.0
    %v494 = vsel %vm167, %v491, 0.0
    %v495 = vsel %vm168, %v490, 0.0
    %v496 = vsel %vm169, %v489, 0.0
    %v497 = vrot.slane %v481, 1
    %v498 = vrot.slane %v482, 1
    %v499 = vrot.slane %v483, 1
    %v500 = vrot.slane %v484, 1
    %v501 = vsel %vm178, %v499, %v500
    %v502 = vsel %vm178, %v498, %v499
    %v503 = vsel %vm178, %v497, %v498
    %v504 = vsel %vm178, %v500, %v497
    %v505 = vsel %vm187, %v503, 0.0
    %v506 = vsel %vm188, %v502, 0.0
    %v507 = vsel %vm189, %v501, 0.0
    %v508 = vsel %vm190, %v504, 0.0
    %513 = vrot.lane.b32.xlu0 %v481, 64
    %v514 = vpop.permute.xlu0 %513
    %515 = vrot.lane.b32.xlu0 %v482, 64
    %v516 = vpop.permute.xlu0 %515
    %517 = vrot.lane.b32.xlu0 %v483, 64
    %v518 = vpop.permute.xlu0 %517
    %519 = vrot.lane.b32.xlu0 %v484, 64
    %v520 = vpop.permute.xlu0 %519
    %v525 = vsel %vm211, %v493, %v514
    %v526 = vsel %vm211, %v494, %v516
    %v527 = vsel %vm211, %v495, %v518
    %v528 = vsel %vm211, %v496, %v520
    %v529 = vld [vmem:[%s10] sm:$0x1]
    %v531 = vperm.slane %v529, 0
    %v533 = vmul.f32 %v120, %v531
    %v534 = vmul.f32 %v121, %v531
    %v535 = vmul.f32 %v122, %v531
    %v536 = vmul.f32 %v123, %v531
    %v537 = vld [vmem:[%s11] sm:$0x1]
    %v539 = vperm.slane %v537, 0
    %v541 = vadd.f32 %v533, %v539
    %v542 = vadd.f32 %v534, %v539
    %v543 = vadd.f32 %v535, %v539
    %v544 = vadd.f32 %v536, %v539
    %549 = vrot.lane.b32.xlu0 %v541, 64
    %v550 = vpop.permute.xlu0 %549
    %551 = vrot.lane.b32.xlu0 %v542, 64
    %v552 = vpop.permute.xlu0 %551
    %553 = vrot.lane.b32.xlu0 %v543, 64
    %v554 = vpop.permute.xlu0 %553
    %555 = vrot.lane.b32.xlu0 %v544, 64
    %v556 = vpop.permute.xlu0 %555
    %v561 = vsel %vm211, %v505, %v550
    %v562 = vsel %vm211, %v506, %v552
    %v563 = vsel %vm211, %v507, %v554
    %v564 = vsel %vm211, %v508, %v556
    %v565 = vld [vmem:[%s9] sm:$0x1]
    %v566 = vpack.c.bf16 %v526, %v525
    %v567 = vpack.c.bf16 %v562, %v561
    %v568 = vpack.c.bf16 %v528, %v527
    %v569 = vpack.c.bf16 %v564, %v563
    %v570 = vld [vmem:[%s8] sm:$0xf]
    %v571 = vld [vmem:[%s8 + $0x4] sm:$0xf]
    %v572 = vld [vmem:[%s8 + $0x8] sm:$0xf]
    %v573 = vld [vmem:[%s8 + $0xc] sm:$0xf]
    %v574 = vld [vmem:[%s8 + $0x10] sm:$0xf]
    %v575 = vld [vmem:[%s8 + $0x14] sm:$0xf]
    %v576 = vld [vmem:[%s8 + $0x18] sm:$0xf]
    %v577 = vld [vmem:[%s8 + $0x1c] sm:$0xf]
    %v578 = vld [vmem:[%s8 + $0x20] sm:$0xf]
    %v579 = vld [vmem:[%s8 + $0x24] sm:$0xf]
    %v580 = vld [vmem:[%s8 + $0x28] sm:$0xf]
    %v581 = vld [vmem:[%s8 + $0x2c] sm:$0xf]
    %v582 = vld [vmem:[%s8 + $0x30] sm:$0xf]
    %v583 = vld [vmem:[%s8 + $0x34] sm:$0xf]
    %v584 = vld [vmem:[%s8 + $0x38] sm:$0xf]
    %v585 = vld [vmem:[%s8 + $0x3c] sm:$0xf]
    %v586 = vld [vmem:[%s8 + $0x40] sm:$0xf]
    %v587 = vld [vmem:[%s8 + $0x44] sm:$0xf]
    %v588 = vld [vmem:[%s8 + $0x48] sm:$0xf]
    %v589 = vld [vmem:[%s8 + $0x4c] sm:$0xf]
    %v590 = vld [vmem:[%s8 + $0x50] sm:$0xf]
    %v591 = vld [vmem:[%s8 + $0x54] sm:$0xf]
    %v592 = vld [vmem:[%s8 + $0x58] sm:$0xf]
    %v593 = vld [vmem:[%s8 + $0x5c] sm:$0xf]
    %v594 = vld [vmem:[%s8 + $0x60] sm:$0xf]
    %v595 = vld [vmem:[%s8 + $0x64] sm:$0xf]
    %v596 = vld [vmem:[%s8 + $0x68] sm:$0xf]
    %v597 = vld [vmem:[%s8 + $0x6c] sm:$0xf]
    %v598 = vld [vmem:[%s8 + $0x70] sm:$0xf]
    %v599 = vld [vmem:[%s8 + $0x74] sm:$0xf]
    %v600 = vld [vmem:[%s8 + $0x78] sm:$0xf]
    %v601 = vld [vmem:[%s8 + $0x7c] sm:$0xf]
    %v634 = vunpack.c.l.b16 %v570
    %v635 = vunpack.c.l.b16 %v571
    %v636 = vunpack.c.l.b16 %v572
    %v637 = vunpack.c.l.b16 %v573
    %v638 = vunpack.c.l.b16 %v574
    %v639 = vunpack.c.l.b16 %v575
    %v640 = vunpack.c.l.b16 %v576
    %v641 = vunpack.c.l.b16 %v577
    %v642 = vunpack.c.l.b16 %v578
    %v643 = vunpack.c.l.b16 %v579
    %v644 = vunpack.c.l.b16 %v580
    %v645 = vunpack.c.l.b16 %v581
    %v646 = vunpack.c.l.b16 %v582
    %v647 = vunpack.c.l.b16 %v583
    %v648 = vunpack.c.l.b16 %v584
    %v649 = vunpack.c.l.b16 %v585
    %v650 = vunpack.c.l.b16 %v586
    %v651 = vunpack.c.l.b16 %v587
    %v652 = vunpack.c.l.b16 %v588
    %v653 = vunpack.c.l.b16 %v589
    %v654 = vunpack.c.l.b16 %v590
    %v655 = vunpack.c.l.b16 %v591
    %v656 = vunpack.c.l.b16 %v592
    %v657 = vunpack.c.l.b16 %v593
    %v658 = vunpack.c.l.b16 %v594
    %v659 = vunpack.c.l.b16 %v595
    %v660 = vunpack.c.l.b16 %v596
    %v661 = vunpack.c.l.b16 %v597
    %v662 = vunpack.c.l.b16 %v598
    %v663 = vunpack.c.l.b16 %v599
    %v664 = vunpack.c.l.b16 %v600
    %v665 = vunpack.c.l.b16 %v601
    %v666 = vpack.c.b16 %v635, %v634
    %v667 = vpack.c.b16 %v637, %v636
    %v668 = vpack.c.b16 %v639, %v638
    %v669 = vpack.c.b16 %v641, %v640
    %v670 = vpack.c.b16 %v643, %v642
    %v671 = vpack.c.b16 %v645, %v644
    %v672 = vpack.c.b16 %v647, %v646
    %v673 = vpack.c.b16 %v649, %v648
    %v674 = vpack.c.b16 %v651, %v650
    %v675 = vpack.c.b16 %v653, %v652
    %v676 = vpack.c.b16 %v655, %v654
    %v677 = vpack.c.b16 %v657, %v656
    %v678 = vpack.c.b16 %v659, %v658
    %v679 = vpack.c.b16 %v661, %v660
    %v680 = vpack.c.b16 %v663, %v662
    %v681 = vpack.c.b16 %v665, %v664
    %698 = vmatpush.bf16.msra.mxu0 %v673
    %699 = vmatpush.bf16.msra.mxu0 %v672
    %700 = vmatpush.bf16.msra.mxu0 %v671
    %701 = vmatpush.bf16.msra.mxu0 %v670
    %702 = vmatpush.bf16.msra.mxu0 %v669
    %703 = vmatpush.bf16.msra.mxu0 %v668
    %704 = vmatpush.bf16.msra.mxu0 %v667
    %705 = vmatpush.bf16.msra.mxu0 %v666
    %706 = vmatmul.bf16.gmra.mxu0 %v566
    %v707 = vpop.f32.mrf.mxu0
    %v708 = vadd.f32 0.0, %v707
    %v709 = vpop.f32.mrf.mxu0
    %v710 = vadd.f32 0.0, %v709
    %711 = vmatmul.bf16.gmra.mxu0 %v568
    %v712 = vpop.f32.mrf.mxu0
    %v713 = vadd.f32 0.0, %v712
    %v714 = vpop.f32.mrf.mxu0
    %v715 = vadd.f32 0.0, %v714
    %716 = vdwg.mxu0
    %717 = vmatpush.bf16.msra.mxu0 %v681
    %718 = vmatpush.bf16.msra.mxu0 %v680
    %719 = vmatpush.bf16.msra.mxu0 %v679
    %720 = vmatpush.bf16.msra.mxu0 %v678
    %721 = vmatpush.bf16.msra.mxu0 %v677
    %722 = vmatpush.bf16.msra.mxu0 %v676
    %723 = vmatpush.bf16.msra.mxu0 %v675
    %724 = vmatpush.bf16.msra.mxu0 %v674
    %725 = vmatmul.bf16.gmra.mxu0 %v567
    %v726 = vpop.f32.mrf.mxu0
    %v727 = vadd.f32 %v708, %v726
    %v728 = vpop.f32.mrf.mxu0
    %v729 = vadd.f32 %v710, %v728
    %730 = vmatmul.bf16.gmra.mxu0 %v569
    %v731 = vpop.f32.mrf.mxu0
    %v732 = vadd.f32 %v713, %v731
    %v733 = vpop.f32.mrf.mxu0
    %v734 = vadd.f32 %v715, %v733
    %735 = vdwg.mxu0
    %v737 = vperm.slane %v565, 0
    %v739 = vadd.f32 %v737, %v727
    %v740 = vadd.f32 %v737, %v729
    %v741 = vadd.f32 %v737, %v732
    %v742 = vadd.f32 %v737, %v734
    %743 = vst [vmem:[#allocation5] sm:$0xff] %v739
    %744 = vst [vmem:[#allocation5 + $0x8] sm:$0xff] %v740
    %745 = vst [vmem:[#allocation5 + $0x10] sm:$0xff] %v741
    %746 = vst [vmem:[#allocation5 + $0x18] sm:$0xff] %v742
    // Predicated region
    $region54: #{tpu_custom_call.1} parent=1 // pred_check
      _
    $region55: #{tpu_custom_call.1} parent=1 // pred_check_branch
      %748 = sbr.rel (0) target = $region57
    $region56: #{tpu_custom_call.1} parent=1 // pred_region
      %750 = vsyncadd [#allocation4], 0
      %s751 = sshll.u32 [#allocation5], 4
      %s752 = int_to_ptr.vmem [resolvable:$true] %s751
      %s753 = sshll.u32 %s12, 4
      %s754 = int_to_ptr.hbm [resolvable:$true] %s753
      %759 = dma.vmem_to_hbm [thread:$0]  %s752, 512, %s754, [#allocation4], 128, 128, 8
    $region57: #{tpu_custom_call.1} parent=1 // pred_fallthru
      _
    // Predicated region
    $region58: #{tpu_custom_call.1} parent=1 // pred_check
      _
    $region59: #{tpu_custom_call.1} parent=1 // pred_check_branch
      %761 = sbr.rel (0) target = $region61
    $region60: #{tpu_custom_call.1} parent=1 // pred_region
      %763 = dma.done [#allocation4], 512
    $region61: #{tpu_custom_call.1} parent=1 // pred_fallthru
      _
    %764 = vsyncpa [#allocation3], 1
    %765 = vsyncpa [#allocation4], 1

</llo_original>
